<compile_context>
chip_gen: v5e
topology: v5e:2x2
jax: 0.10.0
libtpu: 0.0.40
codegen_flags: <defaults>
</compile_context>

<pallas_src>
import jax
import jax.numpy as jnp
import numpy as np
from jax.experimental import pallas as pl
from jax.experimental.pallas import tpu as pltpu

HIDDEN = 256
LANE = 128
SMALL_BATCH = 512          # <= this: single-tile grid (acting / per-env-step path)
LARGE_TILE_B = 1024        # training-size batches: sweep 512-2048 if tuning


def _round_up(x, m):
    return ((x + m - 1) // m) * m


def policy_kernel(x_ref, w1_ref, b1_ref, w2_ref, b2_ref, w3_ref, b3_ref, out_ref):
    # Weights arrive pre-cast to bf16 (halves resident VMEM + DMA bytes); all
    # elementwise math (bias add, ReLU, softmax) stays in f32 on the VPU/EUP.
    x = x_ref[...].astype(jnp.bfloat16)
    h1 = jnp.dot(x, w1_ref[...], preferred_element_type=jnp.float32) + b1_ref[...]
    h1 = jnp.maximum(h1, 0.0)
    h2 = jnp.dot(h1.astype(jnp.bfloat16), w2_ref[...],
                 preferred_element_type=jnp.float32) + b2_ref[...]
    h2 = jnp.maximum(h2, 0.0)
    logits = jnp.dot(h2.astype(jnp.bfloat16), w3_ref[...],
                     preferred_element_type=jnp.float32) + b3_ref[...]
    # Softmax over the lane axis. Padded action columns carry bias = -1e30, so
    # exp underflows to exactly 0 and they contribute nothing to the denominator.
    m = jnp.max(logits, axis=-1, keepdims=True)
    e = jnp.exp(logits - m)
    denom = jnp.sum(e, axis=-1, keepdims=True)
    # Exact divide (not approx reciprocal): kernel is writeback-bound, so this
    # is off the critical path and keeps probabilities summing to 1 at f32.
    probs = e / denom
    out_ref[...] = probs.astype(out_ref.dtype)


def policy_forward(state, params, n_actions, tile_b=None, out_dtype=jnp.bfloat16):
    """state: (B, D) f32/bf16 -> (B, n_actions) `out_dtype` action probabilities.

    Probabilities are emitted as bf16 by default to halve the dominant HBM
    writeback stream; pass out_dtype=jnp.float32 if the caller needs f32.
    """
    w1, b1, w2, b2, w3, b3 = params
    B, D = state.shape

    # Tile-size policy:
    #   * small acting batches -> one tile, grid=(1,) (no per-step overhead),
    #   * large training batches -> 1024-row tiles (amortizes ~0.35us/step and
    #     lands in the ~86%-of-HBM-roofline regime for mem-bound kernels).
    # Per-tile VMEM at 1024 rows: x 1024xD f32 + out 1024x128 bf16 + h1/h2 temps
    # (~2.5 MiB) + ~330 KiB bf16 weights -> far under the 32 MiB limit even with
    # double-buffering on v7x's 64 MiB physical VMEM.
    if tile_b is None:
        tile_b = LARGE_TILE_B if B > SMALL_BATCH else _round_up(B, 8)
    tile_b = max(8, _round_up(tile_b, 8))
    if B <= tile_b:
        tile_b = _round_up(B, 8)          # single tile covers the whole batch
    b_pad = _round_up(B, tile_b)
    grid = (b_pad // tile_b,)

    # Pad the action head to exactly one full lane width (128) for unmasked
    # lane-dense stores; do NOT pad further (it would only grow the dominant
    # output writeback, the 3rd matmul's FLOPs are negligible).
    n_pad = _round_up(max(n_actions, 1), LANE)
    w3p = jnp.zeros((HIDDEN, n_pad), jnp.float32).at[:, :n_actions].set(w3)
    b3p = jnp.full((1, n_pad), -1e30, jnp.float32).at[:, :n_actions].set(
        b3.reshape(1, n_actions))

    # bf16 weights for the MXU; biases stay f32.
    w1b = w1.astype(jnp.bfloat16)
    w2b = w2.astype(jnp.bfloat16)
    w3b = w3p.astype(jnp.bfloat16)
    b1f = b1.reshape(1, HIDDEN).astype(jnp.float32)
    b2f = b2.reshape(1, HIDDEN).astype(jnp.float32)

    x = state          # bf16 inputs pass through untouched (no extra cast pass)
    if b_pad != B:
        x = jnp.pad(x, ((0, b_pad - B), (0, 0)))

    const = lambda i: (0, 0)   # weights/biases resident in VMEM across the grid
    out = pl.pallas_call(
        policy_kernel,
        out_shape=jax.ShapeDtypeStruct((b_pad, n_pad), out_dtype),
        grid=grid,
        in_specs=[
            pl.BlockSpec((tile_b, D), lambda i: (i, 0)),      # activations: pipelined
            pl.BlockSpec((D, HIDDEN), const),                 # w1
            pl.BlockSpec((1, HIDDEN), const),                 # b1
            pl.BlockSpec((HIDDEN, HIDDEN), const),            # w2
            pl.BlockSpec((1, HIDDEN), const),                 # b2
            pl.BlockSpec((HIDDEN, n_pad), const),             # w3 (padded head)
            pl.BlockSpec((1, n_pad), const),                  # b3 (padded head)
        ],
        out_specs=pl.BlockSpec((tile_b, n_pad), lambda i: (i, 0)),
        compiler_params=pltpu.CompilerParams(
            # TODO(synk): on v7x confirm in xprof that both TensorCores run; if
            # one sits idle, switch this axis to pltpu.CORE_PARALLEL.
            dimension_semantics=("parallel",),
            vmem_limit_bytes=32 * 1024 * 1024,   # sized for v7x's 64 MiB physical
        ),
    )(x, w1b, b1f, w2b, b2f, w3b, b3p)

    return out[:B, :n_actions]


def init_params(key, input_shape, n_actions):
    """Deterministic PyTorch-style init: U(-1/sqrt(fan_in), 1/sqrt(fan_in))."""
    keys = jax.random.split(key, 6)

    def linear(kw, kb, fan_in, fan_out):
        bound = 1.0 / np.sqrt(fan_in)
        w = jax.random.uniform(kw, (fan_in, fan_out), jnp.float32, -bound, bound)
        b = jax.random.uniform(kb, (1, fan_out), jnp.float32, -bound, bound)
        return w, b

    w1, b1 = linear(keys[0], keys[1], input_shape, HIDDEN)
    w2, b2 = linear(keys[2], keys[3], HIDDEN, HIDDEN)
    w3, b3 = linear(keys[4], keys[5], HIDDEN, n_actions)
    return (w1, b1, w2, b2, w3, b3)


def reference_forward(state, params):
    w1, b1, w2, b2, w3, b3 = params
    h1 = jnp.maximum(state @ w1 + b1, 0.0)
    h2 = jnp.maximum(h1 @ w2 + b2, 0.0)
    return jax.nn.softmax(h2 @ w3 + b3, axis=-1)


if __name__ == "__main__":
    key = jax.random.PRNGKey(0)
    k_params, k_state = jax.random.split(key)

    batch = 50          # deliberately not a multiple of 8 to exercise padding
    input_shape = 32    # environment observation dimension
    n_actions = 4

    params = init_params(k_params, input_shape, n_actions)
    state = jax.random.normal(k_state, (batch, input_shape), dtype=jnp.float32)

    # Small acting batch -> single-tile grid=(1,) path.
    probs = policy_forward(state, params, n_actions)
    probs = jax.block_until_ready(probs)

    ref = reference_forward(state, params)
    assert probs.shape == (batch, n_actions), probs.shape
    probs_f32 = np.asarray(probs, dtype=np.float32)
    # bf16 MXU operands + bf16 output => loosen tolerance vs. the pure-f32 reference.
    np.testing.assert_allclose(probs_f32, np.asarray(ref), rtol=2e-2, atol=2e-2)
    np.testing.assert_allclose(probs_f32.sum(-1), 1.0, rtol=1e-2, atol=1e-2)

    # TODO(synk): torch.distributions.Categorical(probs) sampling is left to the
    # caller; the kernel returns the probabilities that parameterize it.
    print("KERNEL_OK")
</pallas_src>

<mosaic_0001>
module attributes {stable_mosaic.version = 11 : i64} {
  func.func @policy_kernel(%arg0: i32, %arg1: memref<56x32xf32, #tpu.memory_space<vmem>>, %arg2: memref<32x256xbf16, #tpu.memory_space<vmem>>, %arg3: memref<1x256xf32, #tpu.memory_space<vmem>>, %arg4: memref<256x256xbf16, #tpu.memory_space<vmem>>, %arg5: memref<1x256xf32, #tpu.memory_space<vmem>>, %arg6: memref<256x128xbf16, #tpu.memory_space<vmem>>, %arg7: memref<1x128xf32, #tpu.memory_space<vmem>>, %arg8: memref<56x128xbf16, #tpu.memory_space<vmem>>) attributes {dimension_semantics = [#tpu.dimension_semantics<parallel>], iteration_bounds = array<i64: 1>, scalar_prefetch = 0 : i64, scratch_operands = 0 : i64, tpu.core_type = #tpu.core_type<tc>, window_params = [{transform_indices = @transform_0, window_bounds = array<i64: 56, 32>}, {pipeline_mode = #tpu.pipeline_mode<synchronous>, transform_indices = @transform_1, window_bounds = array<i64: 32, 256>}, {pipeline_mode = #tpu.pipeline_mode<synchronous>, transform_indices = @transform_2, window_bounds = array<i64: 1, 256>}, {pipeline_mode = #tpu.pipeline_mode<synchronous>, transform_indices = @transform_3, window_bounds = array<i64: 256, 256>}, {pipeline_mode = #tpu.pipeline_mode<synchronous>, transform_indices = @transform_4, window_bounds = array<i64: 1, 256>}, {pipeline_mode = #tpu.pipeline_mode<synchronous>, transform_indices = @transform_5, window_bounds = array<i64: 256, 128>}, {pipeline_mode = #tpu.pipeline_mode<synchronous>, transform_indices = @transform_6, window_bounds = array<i64: 1, 128>}, {transform_indices = @transform_7, window_bounds = array<i64: 56, 128>}]} {
    %c0 = arith.constant 0 : index
    %c0_0 = arith.constant 0 : index
    %0 = vector.load %arg1[%c0, %c0_0] : memref<56x32xf32, #tpu.memory_space<vmem>>, vector<56x32xf32>
    %1 = arith.truncf %0 : vector<56x32xf32> to vector<56x32xbf16>
    %c0_1 = arith.constant 0 : index
    %c0_2 = arith.constant 0 : index
    %2 = vector.load %arg2[%c0_1, %c0_2] : memref<32x256xbf16, #tpu.memory_space<vmem>>, vector<32x256xbf16>
    %cst = arith.constant dense<0.000000e+00> : vector<56x256xf32>
    %3 = tpu.matmul %1, %2, %cst {dimension_numbers = #tpu.dot_dimension_numbers<[1], [0], [0], [1], [0, 0, 1, 1], [], []>} : vector<56x32xbf16>, vector<32x256xbf16>, vector<56x256xf32> -> vector<56x256xf32>
    %c0_3 = arith.constant 0 : index
    %c0_4 = arith.constant 0 : index
    %4 = vector.load %arg3[%c0_3, %c0_4] : memref<1x256xf32, #tpu.memory_space<vmem>>, vector<1x256xf32>
    %5 = vector.broadcast %4 : vector<1x256xf32> to vector<56x256xf32>
    %6 = arith.addf %3, %5 : vector<56x256xf32>
    %cst_5 = arith.constant 0.000000e+00 : f32
    %7 = vector.broadcast %cst_5 : f32 to vector<56x256xf32>
    %8 = arith.maximumf %6, %7 : vector<56x256xf32>
    %9 = arith.truncf %8 : vector<56x256xf32> to vector<56x256xbf16>
    %c0_6 = arith.constant 0 : index
    %c0_7 = arith.constant 0 : index
    %10 = vector.load %arg4[%c0_6, %c0_7] : memref<256x256xbf16, #tpu.memory_space<vmem>>, vector<256x256xbf16>
    %cst_8 = arith.constant dense<0.000000e+00> : vector<56x256xf32>
    %11 = tpu.matmul %9, %10, %cst_8 {dimension_numbers = #tpu.dot_dimension_numbers<[1], [0], [0], [1], [0, 0, 1, 1], [], []>} : vector<56x256xbf16>, vector<256x256xbf16>, vector<56x256xf32> -> vector<56x256xf32>
    %c0_9 = arith.constant 0 : index
    %c0_10 = arith.constant 0 : index
    %12 = vector.load %arg5[%c0_9, %c0_10] : memref<1x256xf32, #tpu.memory_space<vmem>>, vector<1x256xf32>
    %13 = vector.broadcast %12 : vector<1x256xf32> to vector<56x256xf32>
    %14 = arith.addf %11, %13 : vector<56x256xf32>
    %cst_11 = arith.constant 0.000000e+00 : f32
    %15 = vector.broadcast %cst_11 : f32 to vector<56x256xf32>
    %16 = arith.maximumf %14, %15 : vector<56x256xf32>
    %17 = arith.truncf %16 : vector<56x256xf32> to vector<56x256xbf16>
    %c0_12 = arith.constant 0 : index
    %c0_13 = arith.constant 0 : index
    %18 = vector.load %arg6[%c0_12, %c0_13] : memref<256x128xbf16, #tpu.memory_space<vmem>>, vector<256x128xbf16>
    %cst_14 = arith.constant dense<0.000000e+00> : vector<56x128xf32>
    %19 = tpu.matmul %17, %18, %cst_14 {dimension_numbers = #tpu.dot_dimension_numbers<[1], [0], [0], [1], [0, 0, 1, 1], [], []>} : vector<56x256xbf16>, vector<256x128xbf16>, vector<56x128xf32> -> vector<56x128xf32>
    %c0_15 = arith.constant 0 : index
    %c0_16 = arith.constant 0 : index
    %20 = vector.load %arg7[%c0_15, %c0_16] : memref<1x128xf32, #tpu.memory_space<vmem>>, vector<1x128xf32>
    %21 = vector.broadcast %20 : vector<1x128xf32> to vector<56x128xf32>
    %22 = arith.addf %19, %21 : vector<56x128xf32>
    %cst_17 = arith.constant dense<0xFF800000> : vector<56xf32>
    %23 = vector.multi_reduction <maximumf>, %22, %cst_17 [1] : vector<56x128xf32> to vector<56xf32>
    %24 = vector.shape_cast %23 : vector<56xf32> to vector<56x1xf32>
    %25 = vector.broadcast %24 : vector<56x1xf32> to vector<56x128xf32>
    %26 = arith.subf %22, %25 : vector<56x128xf32>
    %27 = math.exp %26 : vector<56x128xf32>
    %cst_18 = arith.constant dense<0.000000e+00> : vector<56xf32>
    %28 = vector.multi_reduction <add>, %27, %cst_18 [1] : vector<56x128xf32> to vector<56xf32>
    %29 = vector.shape_cast %28 : vector<56xf32> to vector<56x1xf32>
    %30 = vector.broadcast %29 : vector<56x1xf32> to vector<56x128xf32>
    %31 = arith.divf %27, %30 : vector<56x128xf32>
    %32 = arith.truncf %31 : vector<56x128xf32> to vector<56x128xbf16>
    %c0_19 = arith.constant 0 : index
    %c0_20 = arith.constant 0 : index
    %33 = vector.load %arg8[%c0_19, %c0_20] : memref<56x128xbf16, #tpu.memory_space<vmem>>, vector<56x128xbf16>
    tpu.vector_store %arg8[%c0_19, %c0_20], %32 {strides = array<i32>} : memref<56x128xbf16, #tpu.memory_space<vmem>>, vector<56x128xbf16>,
    return
  }
  func.func @transform_0(%arg0: i32) -> (i32, i32) {
    %c0_i32 = arith.constant 0 : i32
    %c0_i32_0 = arith.constant 0 : i32
    return %arg0, %c0_i32 : i32, i32
  }
  func.func @transform_1(%arg0: i32) -> (i32, i32) {
    %c0_i32 = arith.constant 0 : i32
    %c0_i32_0 = arith.constant 0 : i32
    %c0_i32_1 = arith.constant 0 : i32
    return %c0_i32, %c0_i32_0 : i32, i32
  }
  func.func @transform_2(%arg0: i32) -> (i32, i32) {
    %c0_i32 = arith.constant 0 : i32
    %c0_i32_0 = arith.constant 0 : i32
    %c0_i32_1 = arith.constant 0 : i32
    return %c0_i32, %c0_i32_0 : i32, i32
  }
  func.func @transform_3(%arg0: i32) -> (i32, i32) {
    %c0_i32 = arith.constant 0 : i32
    %c0_i32_0 = arith.constant 0 : i32
    %c0_i32_1 = arith.constant 0 : i32
    return %c0_i32, %c0_i32_0 : i32, i32
  }
  func.func @transform_4(%arg0: i32) -> (i32, i32) {
    %c0_i32 = arith.constant 0 : i32
    %c0_i32_0 = arith.constant 0 : i32
    %c0_i32_1 = arith.constant 0 : i32
    return %c0_i32, %c0_i32_0 : i32, i32
  }
  func.func @transform_5(%arg0: i32) -> (i32, i32) {
    %c0_i32 = arith.constant 0 : i32
    %c0_i32_0 = arith.constant 0 : i32
    %c0_i32_1 = arith.constant 0 : i32
    return %c0_i32, %c0_i32_0 : i32, i32
  }
  func.func @transform_6(%arg0: i32) -> (i32, i32) {
    %c0_i32 = arith.constant 0 : i32
    %c0_i32_0 = arith.constant 0 : i32
    %c0_i32_1 = arith.constant 0 : i32
    return %c0_i32, %c0_i32_0 : i32, i32
  }
  func.func @transform_7(%arg0: i32) -> (i32, i32) {
    %c0_i32 = arith.constant 0 : i32
    %c0_i32_0 = arith.constant 0 : i32
    return %arg0, %c0_i32 : i32, i32
  }
}

</mosaic_0001>

<llo_original>
// kernel: tpu_custom_call.1
$region0: #{tpu_custom_call.1}
  #allocation0 [shape = 'u32[]', space=smem, size = 0x4, offset = 0x4, fixed_abs, tag = 'smem constant byte address 0x4 - core index']
  #allocation1 [shape = 'u32[72,128]{1,0:T(1,128)}', space=vmem, size = 0x9000, scoped, tag = 'internal scratch']
  %s0 = inlined_call_operand.vmem [shape: f32[56,32], index: 0, kind: input, shape index: {}]
  %s1 = inlined_call_operand.vmem [shape: bf16[32,256], index: 1, kind: input, shape index: {}]
  %s2 = inlined_call_operand.vmem [shape: f32[1,256], index: 2, kind: input, shape index: {}]
  %s3 = inlined_call_operand.hbm [shape: bf16[256,256], index: 3, kind: input, shape index: {}]
  %s4 = inlined_call_operand.vmem [shape: f32[1,256], index: 4, kind: input, shape index: {}]
  %s5 = inlined_call_operand.hbm [shape: bf16[256,128], index: 5, kind: input, shape index: {}]
  %s6 = inlined_call_operand.vmem [shape: f32[1,128], index: 6, kind: input, shape index: {}]
  %s7 = inlined_call_operand.hbm [shape: bf16[56,128], index: 7, kind: output, shape index: {}]
  %s8 = sld [smem:[#allocation0]]
  $region46: #{tpu_custom_call.1} parent=0
    _
  %s10 = ssub.s32 1, %s8
  %s11 = scalar_select 0, %s10, %s8
  $region1: #{tpu_custom_call.1} parent=0
    #allocation2 [shape = 'u8[131072]{0}', space=vmem, size = 0x20000, scoped, tag = 'input window, operand 3, single buffered']
    #allocation3 [shape = 's32[1]{0}', space=sflag, size = 0x4, scoped, tag = 'scoped memory for tpu_custom_call.1']
    #allocation4 [shape = 's32[1]{0}', space=sflag, size = 0x4, scoped, tag = 'scoped memory for tpu_custom_call.1']
    #allocation5 [shape = 'u8[65536]{0}', space=vmem, size = 0x10000, scoped, tag = 'input window, operand 5, single buffered']
    #allocation6 [shape = 's32[1]{0}', space=sflag, size = 0x4, scoped, tag = 'scoped memory for tpu_custom_call.1']
    #allocation7 [shape = 'u8[14336]{0}', space=vmem, size = 0x3800, scoped, tag = 'output window, operand 0, single buffered']
    %12 = vsyncpa [#allocation3], 0
    %13 = vsyncpa [#allocation6], 0
    %14 = vsyncpa [#allocation4], 0
    // Predicated region
    $region2: #{tpu_custom_call.1} parent=1 // pred_check
      _
    $region3: #{tpu_custom_call.1} parent=1 // pred_check_branch
      %16 = sbr.rel (0) target = $region5
    $region4: #{tpu_custom_call.1} parent=1 // pred_region
      _
    $region5: #{tpu_custom_call.1} parent=1 // pred_fallthru
      _
    // Predicated region
    $region6: #{tpu_custom_call.1} parent=1 // pred_check
      _
    $region7: #{tpu_custom_call.1} parent=1 // pred_check_branch
      %18 = sbr.rel (0) target = $region9
    $region8: #{tpu_custom_call.1} parent=1 // pred_region
      _
    $region9: #{tpu_custom_call.1} parent=1 // pred_fallthru
      _
    // Predicated region
    $region10: #{tpu_custom_call.1} parent=1 // pred_check
      _
    $region11: #{tpu_custom_call.1} parent=1 // pred_check_branch
      %20 = sbr.rel (0) target = $region13
    $region12: #{tpu_custom_call.1} parent=1 // pred_region
      _
    $region13: #{tpu_custom_call.1} parent=1 // pred_fallthru
      _
    // Predicated region
    $region14: #{tpu_custom_call.1} parent=1 // pred_check
      _
    $region15: #{tpu_custom_call.1} parent=1 // pred_check_branch
      %22 = sbr.rel (0) target = $region17
    $region16: #{tpu_custom_call.1} parent=1 // pred_region
      %24 = vsyncadd [#allocation3], 0
      %s25 = sshll.u32 %s3, 4
      %s26 = int_to_ptr.hbm [resolvable:$true] %s25
      %s27 = sshll.u32 [#allocation2], 4
      %s28 = int_to_ptr.vmem [resolvable:$true] %s27
      %33 = dma.hbm_to_vmem [thread:$0]  %s26, 4096, %s28, [#allocation3], 128, 128, 8
    $region17: #{tpu_custom_call.1} parent=1 // pred_fallthru
      _
    // Predicated region
    $region18: #{tpu_custom_call.1} parent=1 // pred_check
      _
    $region19: #{tpu_custom_call.1} parent=1 // pred_check_branch
      %35 = sbr.rel (0) target = $region21
    $region20: #{tpu_custom_call.1} parent=1 // pred_region
      _
    $region21: #{tpu_custom_call.1} parent=1 // pred_fallthru
      _
    // Predicated region
    $region22: #{tpu_custom_call.1} parent=1 // pred_check
      _
    $region23: #{tpu_custom_call.1} parent=1 // pred_check_branch
      %37 = sbr.rel (0) target = $region25
    $region24: #{tpu_custom_call.1} parent=1 // pred_region
      %39 = vsyncadd [#allocation6], 0
      %s40 = sshll.u32 %s5, 4
      %s41 = int_to_ptr.hbm [resolvable:$true] %s40
      %s42 = sshll.u32 [#allocation5], 4
      %s43 = int_to_ptr.vmem [resolvable:$true] %s42
      %48 = dma.hbm_to_vmem [thread:$0]  %s41, 2048, %s43, [#allocation6], 64, 64, 4
    $region25: #{tpu_custom_call.1} parent=1 // pred_fallthru
      _
    // Predicated region
    $region26: #{tpu_custom_call.1} parent=1 // pred_check
      _
    $region27: #{tpu_custom_call.1} parent=1 // pred_check_branch
      %50 = sbr.rel (0) target = $region29
    $region28: #{tpu_custom_call.1} parent=1 // pred_region
      _
    $region29: #{tpu_custom_call.1} parent=1 // pred_fallthru
      _
    // Predicated region
    $region30: #{tpu_custom_call.1} parent=1 // pred_check
      _
    $region31: #{tpu_custom_call.1} parent=1 // pred_check_branch
      %52 = sbr.rel (0) target = $region33
    $region32: #{tpu_custom_call.1} parent=1 // pred_region
      %54 = dma.done [#allocation3], 4096
    $region33: #{tpu_custom_call.1} parent=1 // pred_fallthru
      _
    // Predicated region
    $region34: #{tpu_custom_call.1} parent=1 // pred_check
      _
    $region35: #{tpu_custom_call.1} parent=1 // pred_check_branch
      %56 = sbr.rel (0) target = $region37
    $region36: #{tpu_custom_call.1} parent=1 // pred_region
      %58 = dma.done [#allocation6], 2048
    $region37: #{tpu_custom_call.1} parent=1 // pred_fallthru
      _
    %v60 = vld [vmem:[%s0] sm:$0xff]
    %v61 = vld [vmem:[%s0 + $0x8] sm:$0xff]
    %v62 = vld [vmem:[%s0 + $0x10] sm:$0xff]
    %v63 = vld [vmem:[%s0 + $0x18] sm:$0xff]
    %v64 = vld [vmem:[%s0 + $0x20] sm:$0xff]
    %v65 = vld [vmem:[%s0 + $0x28] sm:$0xff]
    %v66 = vld [vmem:[%s0 + $0x30] sm:$0xff]
    %v67 = vpack.c.bf16 %v61, %v60
    %v68 = vpack.c.bf16 %v63, %v62
    %v69 = vpack.c.bf16 %v65, %v64
    %v70 = vpack.c.bf16 %v66, %v66
    %v71 = vld [vmem:[%s1] sm:$0xff]
    %v72 = vld [vmem:[%s1 + $0x8] sm:$0xff]
    %v73 = vld [vmem:[%s1 + $0x10] sm:$0xff]
    %v74 = vld [vmem:[%s1 + $0x18] sm:$0xff]
    %v75 = vld [vmem:[%s2] sm:$0x3]
    %v77 = vperm.slane %v75, 0
    %v78 = vperm.slane %v75, 1
    %v85 = vunpack.c.l.b16 %v71
    %v86 = vunpack.c.h.b16 %v71
    %v87 = vunpack.c.l.b16 %v72
    %v88 = vunpack.c.h.b16 %v72
    %v89 = vunpack.c.l.b16 %v73
    %v90 = vunpack.c.h.b16 %v73
    %v91 = vunpack.c.l.b16 %v74
    %v92 = vunpack.c.h.b16 %v74
    %v93 = vpack.c.b16 %v87, %v85
    %v94 = vpack.c.b16 %v88, %v86
    %v95 = vpack.c.b16 %v91, %v89
    %v96 = vpack.c.b16 %v92, %v90
    %vm101 = vcmask 261120
    %v103 = vsel %vm101, %v67, 0
    %v106 = vsel %vm101, %v68, 0
    %v109 = vsel %vm101, %v69, 0
    %v112 = vsel %vm101, %v70, 0
    %114 = vmatpush.bf16.msra.mxu0 0
    %115 = vmatpush.bf16.msra.mxu0 0
    %116 = vmatpush.bf16.msra.mxu0 0
    %117 = vmatpush.bf16.msra.mxu0 0
    %118 = vmatpush.bf16.msra.mxu0 0
    %119 = vmatpush.bf16.msra.mxu0 0
    %120 = vmatpush.bf16.msra.mxu0 %v95
    %121 = vmatpush.bf16.msra.mxu0 %v93
    %122 = vmatmul.bf16.gmra.mxu0 %v103
    %v123 = vpop.f32.mrf.mxu0
    %v124 = vadd.f32 %v77, %v123
    %v125 = vpop.f32.mrf.mxu0
    %v126 = vadd.f32 %v77, %v125
    %127 = vmatmul.bf16.gmra.mxu0 %v106
    %v128 = vpop.f32.mrf.mxu0
    %v129 = vadd.f32 %v77, %v128
    %v130 = vpop.f32.mrf.mxu0
    %v131 = vadd.f32 %v77, %v130
    %132 = vmatmul.bf16.gmra.mxu0 %v109
    %v133 = vpop.f32.mrf.mxu0
    %v134 = vadd.f32 %v77, %v133
    %v135 = vpop.f32.mrf.mxu0
    %v136 = vadd.f32 %v77, %v135
    %137 = vmatmul.bf16.gmra.mxu0 %v112
    %v138 = vpop.f32.mrf.mxu0
    %v139 = vadd.f32 %v77, %v138
    %v140 = vpop.f32.mrf.mxu0
    %141 = vdwg.mxu0
    %142 = vmatpush.bf16.msra.mxu0 0
    %143 = vmatpush.bf16.msra.mxu0 0
    %144 = vmatpush.bf16.msra.mxu0 0
    %145 = vmatpush.bf16.msra.mxu0 0
    %146 = vmatpush.bf16.msra.mxu0 0
    %147 = vmatpush.bf16.msra.mxu0 0
    %148 = vmatpush.bf16.msra.mxu0 %v96
    %149 = vmatpush.bf16.msra.mxu0 %v94
    %150 = vmatmul.bf16.gmra.mxu0 %v103
    %v151 = vpop.f32.mrf.mxu0
    %v152 = vadd.f32 %v78, %v151
    %v153 = vpop.f32.mrf.mxu0
    %v154 = vadd.f32 %v78, %v153
    %155 = vmatmul.bf16.gmra.mxu0 %v106
    %v156 = vpop.f32.mrf.mxu0
    %v157 = vadd.f32 %v78, %v156
    %v158 = vpop.f32.mrf.mxu0
    %v159 = vadd.f32 %v78, %v158
    %160 = vmatmul.bf16.gmra.mxu0 %v109
    %v161 = vpop.f32.mrf.mxu0
    %v162 = vadd.f32 %v78, %v161
    %v163 = vpop.f32.mrf.mxu0
    %v164 = vadd.f32 %v78, %v163
    %165 = vmatmul.bf16.gmra.mxu0 %v112
    %v166 = vpop.f32.mrf.mxu0
    %v167 = vadd.f32 %v78, %v166
    %v168 = vpop.f32.mrf.mxu0
    %169 = vdwg.mxu0
    %v170 = vmax.f32 %v124, 0.0
    %v171 = vmax.f32 %v152, 0.0
    %v172 = vmax.f32 %v126, 0.0
    %v173 = vmax.f32 %v154, 0.0
    %v174 = vmax.f32 %v129, 0.0
    %v175 = vmax.f32 %v157, 0.0
    %v176 = vmax.f32 %v131, 0.0
    %v177 = vmax.f32 %v159, 0.0
    %v178 = vmax.f32 %v134, 0.0
    %v179 = vmax.f32 %v162, 0.0
    %v180 = vmax.f32 %v136, 0.0
    %v181 = vmax.f32 %v164, 0.0
    %v182 = vmax.f32 %v139, 0.0
    %v183 = vmax.f32 %v167, 0.0
    %v184 = vpack.c.bf16 %v172, %v170
    %v185 = vpack.c.bf16 %v173, %v171
    %v186 = vpack.c.bf16 %v176, %v174
    %v187 = vpack.c.bf16 %v177, %v175
    %v188 = vpack.c.bf16 %v180, %v178
    %v189 = vpack.c.bf16 %v181, %v179
    %v190 = vpack.c.bf16 %v182, %v182
    %v191 = vpack.c.bf16 %v183, %v183
    %v192 = vld [vmem:[#allocation2] sm:$0xff]
    %v193 = vld [vmem:[#allocation2 + $0x8] sm:$0xff]
    %v194 = vld [vmem:[#allocation2 + $0x10] sm:$0xff]
    %v195 = vld [vmem:[#allocation2 + $0x18] sm:$0xff]
    %v196 = vld [vmem:[#allocation2 + $0x20] sm:$0xff]
    %v197 = vld [vmem:[#allocation2 + $0x28] sm:$0xff]
    %v198 = vld [vmem:[#allocation2 + $0x30] sm:$0xff]
    %v199 = vld [vmem:[#allocation2 + $0x38] sm:$0xff]
    %v200 = vld [vmem:[#allocation2 + $0x40] sm:$0xff]
    %v201 = vld [vmem:[#allocation2 + $0x48] sm:$0xff]
    %v202 = vld [vmem:[#allocation2 + $0x50] sm:$0xff]
    %v203 = vld [vmem:[#allocation2 + $0x58] sm:$0xff]
    %v204 = vld [vmem:[#allocation2 + $0x60] sm:$0xff]
    %v205 = vld [vmem:[#allocation2 + $0x68] sm:$0xff]
    %v206 = vld [vmem:[#allocation2 + $0x70] sm:$0xff]
    %v207 = vld [vmem:[#allocation2 + $0x78] sm:$0xff]
    %v208 = vld [vmem:[#allocation2 + $0x80] sm:$0xff]
    %v209 = vld [vmem:[#allocation2 + $0x88] sm:$0xff]
    %v210 = vld [vmem:[#allocation2 + $0x90] sm:$0xff]
    %v211 = vld [vmem:[#allocation2 + $0x98] sm:$0xff]
    %v212 = vld [vmem:[#allocation2 + $0xa0] sm:$0xff]
    %v213 = vld [vmem:[#allocation2 + $0xa8] sm:$0xff]
    %v214 = vld [vmem:[#allocation2 + $0xb0] sm:$0xff]
    %v215 = vld [vmem:[#allocation2 + $0xb8] sm:$0xff]
    %v216 = vld [vmem:[#allocation2 + $0xc0] sm:$0xff]
    %v217 = vld [vmem:[#allocation2 + $0xc8] sm:$0xff]
    %v218 = vld [vmem:[#allocation2 + $0xd0] sm:$0xff]
    %v219 = vld [vmem:[#allocation2 + $0xd8] sm:$0xff]
    %v220 = vld [vmem:[#allocation2 + $0xe0] sm:$0xff]
    %v221 = vld [vmem:[#allocation2 + $0xe8] sm:$0xff]
    %v222 = vld [vmem:[#allocation2 + $0xf0] sm:$0xff]
    %v223 = vld [vmem:[#allocation2 + $0xf8] sm:$0xff]
    %v224 = vld [vmem:[%s4] sm:$0x3]
    %v226 = vperm.slane %v224, 0
    %v227 = vperm.slane %v224, 1
    %v262 = vunpack.c.l.b16 %v192
    %v263 = vunpack.c.h.b16 %v192
    %v264 = vunpack.c.l.b16 %v193
    %v265 = vunpack.c.h.b16 %v193
    %v266 = vunpack.c.l.b16 %v194
    %v267 = vunpack.c.h.b16 %v194
    %v268 = vunpack.c.l.b16 %v195
    %v269 = vunpack.c.h.b16 %v195
    %v270 = vunpack.c.l.b16 %v196
    %v271 = vunpack.c.h.b16 %v196
    %v272 = vunpack.c.l.b16 %v197
    %v273 = vunpack.c.h.b16 %v197
    %v274 = vunpack.c.l.b16 %v198
    %v275 = vunpack.c.h.b16 %v198
    %v276 = vunpack.c.l.b16 %v199
    %v277 = vunpack.c.h.b16 %v199
    %v278 = vunpack.c.l.b16 %v200
    %v279 = vunpack.c.h.b16 %v200
    %v280 = vunpack.c.l.b16 %v201
    %v281 = vunpack.c.h.b16 %v201
    %v282 = vunpack.c.l.b16 %v202
    %v283 = vunpack.c.h.b16 %v202
    %v284 = vunpack.c.l.b16 %v203
    %v285 = vunpack.c.h.b16 %v203
    %v286 = vunpack.c.l.b16 %v204
    %v287 = vunpack.c.h.b16 %v204
    %v288 = vunpack.c.l.b16 %v205
    %v289 = vunpack.c.h.b16 %v205
    %v290 = vunpack.c.l.b16 %v206
    %v291 = vunpack.c.h.b16 %v206
    %v292 = vunpack.c.l.b16 %v207
    %v293 = vunpack.c.h.b16 %v207
    %v294 = vunpack.c.l.b16 %v208
    %v295 = vunpack.c.h.b16 %v208
    %v296 = vunpack.c.l.b16 %v209
    %v297 = vunpack.c.h.b16 %v209
    %v298 = vunpack.c.l.b16 %v210
    %v299 = vunpack.c.h.b16 %v210
    %v300 = vunpack.c.l.b16 %v211
    %v301 = vunpack.c.h.b16 %v211
    %v302 = vunpack.c.l.b16 %v212
    %v303 = vunpack.c.h.b16 %v212
    %v304 = vunpack.c.l.b16 %v213
    %v305 = vunpack.c.h.b16 %v213
    %v306 = vunpack.c.l.b16 %v214
    %v307 = vunpack.c.h.b16 %v214
    %v308 = vunpack.c.l.b16 %v215
    %v309 = vunpack.c.h.b16 %v215
    %v310 = vunpack.c.l.b16 %v216
    %v311 = vunpack.c.h.b16 %v216
    %v312 = vunpack.c.l.b16 %v217
    %v313 = vunpack.c.h.b16 %v217
    %v314 = vunpack.c.l.b16 %v218
    %v315 = vunpack.c.h.b16 %v218
    %v316 = vunpack.c.l.b16 %v219
    %v317 = vunpack.c.h.b16 %v219
    %v318 = vunpack.c.l.b16 %v220
    %v319 = vunpack.c.h.b16 %v220
    %v320 = vunpack.c.l.b16 %v221
    %v321 = vunpack.c.h.b16 %v221
    %v322 = vunpack.c.l.b16 %v222
    %v323 = vunpack.c.h.b16 %v222
    %v324 = vunpack.c.l.b16 %v223
    %v325 = vunpack.c.h.b16 %v223
    %v326 = vpack.c.b16 %v264, %v262
    %v327 = vpack.c.b16 %v265, %v263
    %v328 = vpack.c.b16 %v268, %v266
    %v329 = vpack.c.b16 %v269, %v267
    %v330 = vpack.c.b16 %v272, %v270
    %v331 = vpack.c.b16 %v273, %v271
    %v332 = vpack.c.b16 %v276, %v274
    %v333 = vpack.c.b16 %v277, %v275
    %v334 = vpack.c.b16 %v280, %v278
    %v335 = vpack.c.b16 %v281, %v279
    %v336 = vpack.c.b16 %v284, %v282
    %v337 = vpack.c.b16 %v285, %v283
    %v338 = vpack.c.b16 %v288, %v286
    %v339 = vpack.c.b16 %v289, %v287
    %v340 = vpack.c.b16 %v292, %v290
    %v341 = vpack.c.b16 %v293, %v291
    %v342 = vpack.c.b16 %v296, %v294
    %v343 = vpack.c.b16 %v297, %v295
    %v344 = vpack.c.b16 %v300, %v298
    %v345 = vpack.c.b16 %v301, %v299
    %v346 = vpack.c.b16 %v304, %v302
    %v347 = vpack.c.b16 %v305, %v303
    %v348 = vpack.c.b16 %v308, %v306
    %v349 = vpack.c.b16 %v309, %v307
    %v350 = vpack.c.b16 %v312, %v310
    %v351 = vpack.c.b16 %v313, %v311
    %v352 = vpack.c.b16 %v316, %v314
    %v353 = vpack.c.b16 %v317, %v315
    %v354 = vpack.c.b16 %v320, %v318
    %v355 = vpack.c.b16 %v321, %v319
    %v356 = vpack.c.b16 %v324, %v322
    %v357 = vpack.c.b16 %v325, %v323
    %390 = vmatpush.bf16.msra.mxu0 %v340
    %391 = vmatpush.bf16.msra.mxu0 %v338
    %392 = vmatpush.bf16.msra.mxu0 %v336
    %393 = vmatpush.bf16.msra.mxu0 %v334
    %394 = vmatpush.bf16.msra.mxu0 %v332
    %395 = vmatpush.bf16.msra.mxu0 %v330
    %396 = vmatpush.bf16.msra.mxu0 %v328
    %397 = vmatpush.bf16.msra.mxu0 %v326
    %398 = vmatmul.bf16.gmra.mxu0 %v184
    %v399 = vpop.f32.mrf.mxu0
    %v400 = vadd.f32 %v226, %v399
    %v401 = vpop.f32.mrf.mxu0
    %v402 = vadd.f32 %v226, %v401
    %403 = vmatmul.bf16.gmra.mxu0 %v186
    %v404 = vpop.f32.mrf.mxu0
    %v405 = vadd.f32 %v226, %v404
    %v406 = vpop.f32.mrf.mxu0
    %v407 = vadd.f32 %v226, %v406
    %408 = vmatmul.bf16.gmra.mxu0 %v188
    %v409 = vpop.f32.mrf.mxu0
    %v410 = vadd.f32 %v226, %v409
    %v411 = vpop.f32.mrf.mxu0
    %v412 = vadd.f32 %v226, %v411
    %413 = vmatmul.bf16.gmra.mxu0 %v190
    %v414 = vpop.f32.mrf.mxu0
    %v415 = vadd.f32 %v226, %v414
    %v416 = vpop.f32.mrf.mxu0
    %417 = vdwg.mxu0
    %418 = vmatpush.bf16.msra.mxu0 %v356
    %419 = vmatpush.bf16.msra.mxu0 %v354
    %420 = vmatpush.bf16.msra.mxu0 %v352
    %421 = vmatpush.bf16.msra.mxu0 %v350
    %422 = vmatpush.bf16.msra.mxu0 %v348
    %423 = vmatpush.bf16.msra.mxu0 %v346
    %424 = vmatpush.bf16.msra.mxu0 %v344
    %425 = vmatpush.bf16.msra.mxu0 %v342
    %426 = vmatmul.bf16.gmra.mxu0 %v185
    %v427 = vpop.f32.mrf.mxu0
    %v428 = vadd.f32 %v400, %v427
    %v429 = vpop.f32.mrf.mxu0
    %v430 = vadd.f32 %v402, %v429
    %431 = vmatmul.bf16.gmra.mxu0 %v187
    %v432 = vpop.f32.mrf.mxu0
    %v433 = vadd.f32 %v405, %v432
    %v434 = vpop.f32.mrf.mxu0
    %v435 = vadd.f32 %v407, %v434
    %436 = vmatmul.bf16.gmra.mxu0 %v189
    %v437 = vpop.f32.mrf.mxu0
    %v438 = vadd.f32 %v410, %v437
    %v439 = vpop.f32.mrf.mxu0
    %v440 = vadd.f32 %v412, %v439
    %441 = vmatmul.bf16.gmra.mxu0 %v191
    %v442 = vpop.f32.mrf.mxu0
    %v443 = vadd.f32 %v415, %v442
    %v444 = vpop.f32.mrf.mxu0
    %445 = vdwg.mxu0
    %446 = vmatpush.bf16.msra.mxu0 %v341
    %447 = vmatpush.bf16.msra.mxu0 %v339
    %448 = vmatpush.bf16.msra.mxu0 %v337
    %449 = vmatpush.bf16.msra.mxu0 %v335
    %450 = vmatpush.bf16.msra.mxu0 %v333
    %451 = vmatpush.bf16.msra.mxu0 %v331
    %452 = vmatpush.bf16.msra.mxu0 %v329
    %453 = vmatpush.bf16.msra.mxu0 %v327
    %454 = vmatmul.bf16.gmra.mxu0 %v184
    %v455 = vpop.f32.mrf.mxu0
    %v456 = vadd.f32 %v227, %v455
    %v457 = vpop.f32.mrf.mxu0
    %v458 = vadd.f32 %v227, %v457
    %459 = vmatmul.bf16.gmra.mxu0 %v186
    %v460 = vpop.f32.mrf.mxu0
    %v461 = vadd.f32 %v227, %v460
    %v462 = vpop.f32.mrf.mxu0
    %v463 = vadd.f32 %v227, %v462
    %464 = vmatmul.bf16.gmra.mxu0 %v188
    %v465 = vpop.f32.mrf.mxu0
    %v466 = vadd.f32 %v227, %v465
    %v467 = vpop.f32.mrf.mxu0
    %v468 = vadd.f32 %v227, %v467
    %469 = vmatmul.bf16.gmra.mxu0 %v190
    %v470 = vpop.f32.mrf.mxu0
    %v471 = vadd.f32 %v227, %v470
    %v472 = vpop.f32.mrf.mxu0
    %473 = vdwg.mxu0
    %474 = vmatpush.bf16.msra.mxu0 %v357
    %475 = vmatpush.bf16.msra.mxu0 %v355
    %476 = vmatpush.bf16.msra.mxu0 %v353
    %477 = vmatpush.bf16.msra.mxu0 %v351
    %478 = vmatpush.bf16.msra.mxu0 %v349
    %479 = vmatpush.bf16.msra.mxu0 %v347
    %480 = vmatpush.bf16.msra.mxu0 %v345
    %481 = vmatpush.bf16.msra.mxu0 %v343
    %482 = vmatmul.bf16.gmra.mxu0 %v185
    %v483 = vpop.f32.mrf.mxu0
    %v484 = vadd.f32 %v456, %v483
    %v485 = vpop.f32.mrf.mxu0
    %v486 = vadd.f32 %v458, %v485
    %487 = vmatmul.bf16.gmra.mxu0 %v187
    %v488 = vpop.f32.mrf.mxu0
    %v489 = vadd.f32 %v461, %v488
    %v490 = vpop.f32.mrf.mxu0
    %v491 = vadd.f32 %v463, %v490
    %492 = vmatmul.bf16.gmra.mxu0 %v189
    %v493 = vpop.f32.mrf.mxu0
    %v494 = vadd.f32 %v466, %v493
    %v495 = vpop.f32.mrf.mxu0
    %v496 = vadd.f32 %v468, %v495
    %497 = vmatmul.bf16.gmra.mxu0 %v191
    %v498 = vpop.f32.mrf.mxu0
    %v499 = vadd.f32 %v471, %v498
    %v500 = vpop.f32.mrf.mxu0
    %501 = vdwg.mxu0
    %v502 = vmax.f32 %v428, 0.0
    %v503 = vmax.f32 %v484, 0.0
    %v504 = vmax.f32 %v430, 0.0
    %v505 = vmax.f32 %v486, 0.0
    %v506 = vmax.f32 %v433, 0.0
    %v507 = vmax.f32 %v489, 0.0
    %v508 = vmax.f32 %v435, 0.0
    %v509 = vmax.f32 %v491, 0.0
    %v510 = vmax.f32 %v438, 0.0
    %v511 = vmax.f32 %v494, 0.0
    %v512 = vmax.f32 %v440, 0.0
    %v513 = vmax.f32 %v496, 0.0
    %v514 = vmax.f32 %v443, 0.0
    %v515 = vmax.f32 %v499, 0.0
    %v516 = vpack.c.bf16 %v504, %v502
    %v517 = vpack.c.bf16 %v505, %v503
    %v518 = vpack.c.bf16 %v508, %v506
    %v519 = vpack.c.bf16 %v509, %v507
    %v520 = vpack.c.bf16 %v512, %v510
    %v521 = vpack.c.bf16 %v513, %v511
    %v522 = vpack.c.bf16 %v514, %v514
    %v523 = vpack.c.bf16 %v515, %v515
    %v524 = vld [vmem:[#allocation5] sm:$0xf]
    %v525 = vld [vmem:[#allocation5 + $0x4] sm:$0xf]
    %v526 = vld [vmem:[#allocation5 + $0x8] sm:$0xf]
    %v527 = vld [vmem:[#allocation5 + $0xc] sm:$0xf]
    %v528 = vld [vmem:[#allocation5 + $0x10] sm:$0xf]
    %v529 = vld [vmem:[#allocation5 + $0x14] sm:$0xf]
    %v530 = vld [vmem:[#allocation5 + $0x18] sm:$0xf]
    %v531 = vld [vmem:[#allocation5 + $0x1c] sm:$0xf]
    %v532 = vld [vmem:[#allocation5 + $0x20] sm:$0xf]
    %v533 = vld [vmem:[#allocation5 + $0x24] sm:$0xf]
    %v534 = vld [vmem:[#allocation5 + $0x28] sm:$0xf]
    %v535 = vld [vmem:[#allocation5 + $0x2c] sm:$0xf]
    %v536 = vld [vmem:[#allocation5 + $0x30] sm:$0xf]
    %v537 = vld [vmem:[#allocation5 + $0x34] sm:$0xf]
    %v538 = vld [vmem:[#allocation5 + $0x38] sm:$0xf]
    %v539 = vld [vmem:[#allocation5 + $0x3c] sm:$0xf]
    %v540 = vld [vmem:[#allocation5 + $0x40] sm:$0xf]
    %v541 = vld [vmem:[#allocation5 + $0x44] sm:$0xf]
    %v542 = vld [vmem:[#allocation5 + $0x48] sm:$0xf]
    %v543 = vld [vmem:[#allocation5 + $0x4c] sm:$0xf]
    %v544 = vld [vmem:[#allocation5 + $0x50] sm:$0xf]
    %v545 = vld [vmem:[#allocation5 + $0x54] sm:$0xf]
    %v546 = vld [vmem:[#allocation5 + $0x58] sm:$0xf]
    %v547 = vld [vmem:[#allocation5 + $0x5c] sm:$0xf]
    %v548 = vld [vmem:[#allocation5 + $0x60] sm:$0xf]
    %v549 = vld [vmem:[#allocation5 + $0x64] sm:$0xf]
    %v550 = vld [vmem:[#allocation5 + $0x68] sm:$0xf]
    %v551 = vld [vmem:[#allocation5 + $0x6c] sm:$0xf]
    %v552 = vld [vmem:[#allocation5 + $0x70] sm:$0xf]
    %v553 = vld [vmem:[#allocation5 + $0x74] sm:$0xf]
    %v554 = vld [vmem:[#allocation5 + $0x78] sm:$0xf]
    %v555 = vld [vmem:[#allocation5 + $0x7c] sm:$0xf]
    %v556 = vld [vmem:[%s6] sm:$0x1]
    %v558 = vperm.slane %v556, 0
    %v592 = vunpack.c.l.b16 %v524
    %v593 = vunpack.c.l.b16 %v525
    %v594 = vunpack.c.l.b16 %v526
    %v595 = vunpack.c.l.b16 %v527
    %v596 = vunpack.c.l.b16 %v528
    %v597 = vunpack.c.l.b16 %v529
    %v598 = vunpack.c.l.b16 %v530
    %v599 = vunpack.c.l.b16 %v531
    %v600 = vunpack.c.l.b16 %v532
    %v601 = vunpack.c.l.b16 %v533
    %v602 = vunpack.c.l.b16 %v534
    %v603 = vunpack.c.l.b16 %v535
    %v604 = vunpack.c.l.b16 %v536
    %v605 = vunpack.c.l.b16 %v537
    %v606 = vunpack.c.l.b16 %v538
    %v607 = vunpack.c.l.b16 %v539
    %v608 = vunpack.c.l.b16 %v540
    %v609 = vunpack.c.l.b16 %v541
    %v610 = vunpack.c.l.b16 %v542
    %v611 = vunpack.c.l.b16 %v543
    %v612 = vunpack.c.l.b16 %v544
    %v613 = vunpack.c.l.b16 %v545
    %v614 = vunpack.c.l.b16 %v546
    %v615 = vunpack.c.l.b16 %v547
    %v616 = vunpack.c.l.b16 %v548
    %v617 = vunpack.c.l.b16 %v549
    %v618 = vunpack.c.l.b16 %v550
    %v619 = vunpack.c.l.b16 %v551
    %v620 = vunpack.c.l.b16 %v552
    %v621 = vunpack.c.l.b16 %v553
    %v622 = vunpack.c.l.b16 %v554
    %v623 = vunpack.c.l.b16 %v555
    %v624 = vpack.c.b16 %v593, %v592
    %v625 = vpack.c.b16 %v595, %v594
    %v626 = vpack.c.b16 %v597, %v596
    %v627 = vpack.c.b16 %v599, %v598
    %v628 = vpack.c.b16 %v601, %v600
    %v629 = vpack.c.b16 %v603, %v602
    %v630 = vpack.c.b16 %v605, %v604
    %v631 = vpack.c.b16 %v607, %v606
    %v632 = vpack.c.b16 %v609, %v608
    %v633 = vpack.c.b16 %v611, %v610
    %v634 = vpack.c.b16 %v613, %v612
    %v635 = vpack.c.b16 %v615, %v614
    %v636 = vpack.c.b16 %v617, %v616
    %v637 = vpack.c.b16 %v619, %v618
    %v638 = vpack.c.b16 %v621, %v620
    %v639 = vpack.c.b16 %v623, %v622
    %656 = vmatpush.bf16.msra.mxu0 %v631
    %657 = vmatpush.bf16.msra.mxu0 %v630
    %658 = vmatpush.bf16.msra.mxu0 %v629
    %659 = vmatpush.bf16.msra.mxu0 %v628
    %660 = vmatpush.bf16.msra.mxu0 %v627
    %661 = vmatpush.bf16.msra.mxu0 %v626
    %662 = vmatpush.bf16.msra.mxu0 %v625
    %663 = vmatpush.bf16.msra.mxu0 %v624
    %664 = vmatmul.bf16.gmra.mxu0 %v516
    %v665 = vpop.f32.mrf.mxu0
    %v666 = vadd.f32 %v558, %v665
    %v667 = vpop.f32.mrf.mxu0
    %v668 = vadd.f32 %v558, %v667
    %669 = vmatmul.bf16.gmra.mxu0 %v518
    %v670 = vpop.f32.mrf.mxu0
    %v671 = vadd.f32 %v558, %v670
    %v672 = vpop.f32.mrf.mxu0
    %v673 = vadd.f32 %v558, %v672
    %674 = vmatmul.bf16.gmra.mxu0 %v520
    %v675 = vpop.f32.mrf.mxu0
    %v676 = vadd.f32 %v558, %v675
    %v677 = vpop.f32.mrf.mxu0
    %v678 = vadd.f32 %v558, %v677
    %679 = vmatmul.bf16.gmra.mxu0 %v522
    %v680 = vpop.f32.mrf.mxu0
    %v681 = vadd.f32 %v558, %v680
    %v682 = vpop.f32.mrf.mxu0
    %683 = vdwg.mxu0
    %684 = vmatpush.bf16.msra.mxu0 %v639
    %685 = vmatpush.bf16.msra.mxu0 %v638
    %686 = vmatpush.bf16.msra.mxu0 %v637
    %687 = vmatpush.bf16.msra.mxu0 %v636
    %688 = vmatpush.bf16.msra.mxu0 %v635
    %689 = vmatpush.bf16.msra.mxu0 %v634
    %690 = vmatpush.bf16.msra.mxu0 %v633
    %691 = vmatpush.bf16.msra.mxu0 %v632
    %692 = vmatmul.bf16.gmra.mxu0 %v517
    %v693 = vpop.f32.mrf.mxu0
    %v694 = vadd.f32 %v666, %v693
    %v695 = vpop.f32.mrf.mxu0
    %v696 = vadd.f32 %v668, %v695
    %697 = vmatmul.bf16.gmra.mxu0 %v519
    %v698 = vpop.f32.mrf.mxu0
    %v699 = vadd.f32 %v671, %v698
    %v700 = vpop.f32.mrf.mxu0
    %v701 = vadd.f32 %v673, %v700
    %702 = vmatmul.bf16.gmra.mxu0 %v521
    %v703 = vpop.f32.mrf.mxu0
    %v704 = vadd.f32 %v676, %v703
    %v705 = vpop.f32.mrf.mxu0
    %v706 = vadd.f32 %v678, %v705
    %707 = vmatmul.bf16.gmra.mxu0 %v523
    %v708 = vpop.f32.mrf.mxu0
    %v709 = vadd.f32 %v681, %v708
    %v710 = vpop.f32.mrf.mxu0
    %711 = vdwg.mxu0
    %712 = vmax.xlane.f32.xlu0 %v694
    %v713 = vpop.xlane.xlu0 %712
    %714 = vmax.xlane.f32.xlu0 %v696
    %v715 = vpop.xlane.xlu0 %714
    %716 = vmax.xlane.f32.xlu0 %v699
    %v717 = vpop.xlane.xlu0 %716
    %718 = vmax.xlane.f32.xlu0 %v701
    %v719 = vpop.xlane.xlu0 %718
    %720 = vmax.xlane.f32.xlu0 %v704
    %v721 = vpop.xlane.xlu0 %720
    %722 = vmax.xlane.f32.xlu0 %v706
    %v723 = vpop.xlane.xlu0 %722
    %724 = vmax.xlane.f32.xlu0 %v709
    %v725 = vpop.xlane.xlu0 %724
    %v726 = vsub.f32 %v694, %v713
    %v727 = vsub.f32 %v696, %v715
    %v728 = vsub.f32 %v699, %v717
    %v729 = vsub.f32 %v701, %v719
    %v730 = vsub.f32 %v704, %v721
    %v731 = vsub.f32 %v706, %v723
    %v732 = vsub.f32 %v709, %v725
    %v733 = vmul.f32 %v726, 1.442695
    %v734 = vpow.pop %v733
    %v735 = vmul.f32 %v727, 1.442695
    %v736 = vpow.pop %v735
    %v737 = vmul.f32 %v728, 1.442695
    %v738 = vpow.pop %v737
    %v739 = vmul.f32 %v729, 1.442695
    %v740 = vpow.pop %v739
    %v741 = vmul.f32 %v730, 1.442695
    %v742 = vpow.pop %v741
    %v743 = vmul.f32 %v731, 1.442695
    %v744 = vpow.pop %v743
    %v745 = vmul.f32 %v732, 1.442695
    %v746 = vpow.pop %v745
    %747 = vadd.xlane.f32.xlu0 %v734
    %v748 = vpop.xlane.xlu0 %747
    %749 = vadd.xlane.f32.xlu0 %v736
    %v750 = vpop.xlane.xlu0 %749
    %751 = vadd.xlane.f32.xlu0 %v738
    %v752 = vpop.xlane.xlu0 %751
    %753 = vadd.xlane.f32.xlu0 %v740
    %v754 = vpop.xlane.xlu0 %753
    %755 = vadd.xlane.f32.xlu0 %v742
    %v756 = vpop.xlane.xlu0 %755
    %757 = vadd.xlane.f32.xlu0 %v744
    %v758 = vpop.xlane.xlu0 %757
    %759 = vadd.xlane.f32.xlu0 %v746
    %v760 = vpop.xlane.xlu0 %759
    %v761 = vrcp.pop %v748
    %v762 = vmul.f32 %v748, %v761
    %v763 = vsub.f32 1.0, %v762
    %v764 = vmul.f32 %v761, %v763
    %v765 = vadd.f32 %v761, %v764
    %vm766 = vweird.f32 %v748
    %vm767 = vweird.f32 %v761
    %vm768 = vmor %vm766, %vm767
    %v769 = vsel %vm768, %v761, %v765
    %v770 = vand.u32 2147483647, %v748
    %vm771 = vcmp.eq.f32.partialorder %v770, 8.507059e+37
    %v772 = vand.u32 %v748, 2147483648
    %v773 = vor.u32 1.1754944e-38, %v772
    %v774 = vsel %vm771, %v773, %v769
    %v775 = vmul.f32 %v734, %v774
    %v776 = vrcp.pop %v750
    %v777 = vmul.f32 %v750, %v776
    %v778 = vsub.f32 1.0, %v777
    %v779 = vmul.f32 %v776, %v778
    %v780 = vadd.f32 %v776, %v779
    %vm781 = vweird.f32 %v750
    %vm782 = vweird.f32 %v776
    %vm783 = vmor %vm781, %vm782
    %v784 = vsel %vm783, %v776, %v780
    %v785 = vand.u32 2147483647, %v750
    %vm786 = vcmp.eq.f32.partialorder %v785, 8.507059e+37
    %v787 = vand.u32 %v750, 2147483648
    %v788 = vor.u32 1.1754944e-38, %v787
    %v789 = vsel %vm786, %v788, %v784
    %v790 = vmul.f32 %v736, %v789
    %v791 = vrcp.pop %v752
    %v792 = vmul.f32 %v752, %v791
    %v793 = vsub.f32 1.0, %v792
    %v794 = vmul.f32 %v791, %v793
    %v795 = vadd.f32 %v791, %v794
    %vm796 = vweird.f32 %v752
    %vm797 = vweird.f32 %v791
    %vm798 = vmor %vm796, %vm797
    %v799 = vsel %vm798, %v791, %v795
    %v800 = vand.u32 2147483647, %v752
    %vm801 = vcmp.eq.f32.partialorder %v800, 8.507059e+37
    %v802 = vand.u32 %v752, 2147483648
    %v803 = vor.u32 1.1754944e-38, %v802
    %v804 = vsel %vm801, %v803, %v799
    %v805 = vmul.f32 %v738, %v804
    %v806 = vrcp.pop %v754
    %v807 = vmul.f32 %v754, %v806
    %v808 = vsub.f32 1.0, %v807
    %v809 = vmul.f32 %v806, %v808
    %v810 = vadd.f32 %v806, %v809
    %vm811 = vweird.f32 %v754
    %vm812 = vweird.f32 %v806
    %vm813 = vmor %vm811, %vm812
    %v814 = vsel %vm813, %v806, %v810
    %v815 = vand.u32 2147483647, %v754
    %vm816 = vcmp.eq.f32.partialorder %v815, 8.507059e+37
    %v817 = vand.u32 %v754, 2147483648
    %v818 = vor.u32 1.1754944e-38, %v817
    %v819 = vsel %vm816, %v818, %v814
    %v820 = vmul.f32 %v740, %v819
    %v821 = vrcp.pop %v756
    %v822 = vmul.f32 %v756, %v821
    %v823 = vsub.f32 1.0, %v822
    %v824 = vmul.f32 %v821, %v823
    %v825 = vadd.f32 %v821, %v824
    %vm826 = vweird.f32 %v756
    %vm827 = vweird.f32 %v821
    %vm828 = vmor %vm826, %vm827
    %v829 = vsel %vm828, %v821, %v825
    %v830 = vand.u32 2147483647, %v756
    %vm831 = vcmp.eq.f32.partialorder %v830, 8.507059e+37
    %v832 = vand.u32 %v756, 2147483648
    %v833 = vor.u32 1.1754944e-38, %v832
    %v834 = vsel %vm831, %v833, %v829
    %v835 = vmul.f32 %v742, %v834
    %v836 = vrcp.pop %v758
    %v837 = vmul.f32 %v758, %v836
    %v838 = vsub.f32 1.0, %v837
    %v839 = vmul.f32 %v836, %v838
    %v840 = vadd.f32 %v836, %v839
    %vm841 = vweird.f32 %v758
    %vm842 = vweird.f32 %v836
    %vm843 = vmor %vm841, %vm842
    %v844 = vsel %vm843, %v836, %v840
    %v845 = vand.u32 2147483647, %v758
    %vm846 = vcmp.eq.f32.partialorder %v845, 8.507059e+37
    %v847 = vand.u32 %v758, 2147483648
    %v848 = vor.u32 1.1754944e-38, %v847
    %v849 = vsel %vm846, %v848, %v844
    %v850 = vmul.f32 %v744, %v849
    %v851 = vrcp.pop %v760
    %v852 = vmul.f32 %v760, %v851
    %v853 = vsub.f32 1.0, %v852
    %v854 = vmul.f32 %v851, %v853
    %v855 = vadd.f32 %v851, %v854
    %vm856 = vweird.f32 %v760
    %vm857 = vweird.f32 %v851
    %vm858 = vmor %vm856, %vm857
    %v859 = vsel %vm858, %v851, %v855
    %v860 = vand.u32 2147483647, %v760
    %vm861 = vcmp.eq.f32.partialorder %v860, 8.507059e+37
    %v862 = vand.u32 %v760, 2147483648
    %v863 = vor.u32 1.1754944e-38, %v862
    %v864 = vsel %vm861, %v863, %v859
    %v865 = vmul.f32 %v746, %v864
    %v866 = vpack.c.bf16 %v775, %v775
    %v867 = vpack.c.bf16 %v790, %v790
    %v868 = vpack.c.bf16 %v805, %v805
    %v869 = vpack.c.bf16 %v820, %v820
    %v870 = vpack.c.bf16 %v835, %v835
    %v871 = vpack.c.bf16 %v850, %v850
    %v872 = vpack.c.bf16 %v865, %v865
    %873 = vst [vmem:[#allocation7] sm:$0xf] %v866
    %874 = vst [vmem:[#allocation7 + $0x4] sm:$0xf] %v867
    %875 = vst [vmem:[#allocation7 + $0x8] sm:$0xf] %v868
    %876 = vst [vmem:[#allocation7 + $0xc] sm:$0xf] %v869
    %877 = vst [vmem:[#allocation7 + $0x10] sm:$0xf] %v870
    %878 = vst [vmem:[#allocation7 + $0x14] sm:$0xf] %v871
    %879 = vst [vmem:[#allocation7 + $0x18] sm:$0xf] %v872
    // Predicated region
    $region38: #{tpu_custom_call.1} parent=1 // pred_check
      _
    $region39: #{tpu_custom_call.1} parent=1 // pred_check_branch
      %881 = sbr.rel (0) target = $region41
    $region40: #{tpu_custom_call.1} parent=1 // pred_region
      %883 = vsyncadd [#allocation4], 0
      %s884 = sshll.u32 [#allocation7], 4
      %s885 = int_to_ptr.vmem [resolvable:$true] %s884
      %s886 = sshll.u32 %s7, 4
      %s887 = int_to_ptr.hbm [resolvable:$true] %s886
      %892 = dma.vmem_to_hbm [thread:$0]  %s885, 448, %s887, [#allocation4], 64, 64, 4
    $region41: #{tpu_custom_call.1} parent=1 // pred_fallthru
      _
    // Predicated region
    $region42: #{tpu_custom_call.1} parent=1 // pred_check
      _
    $region43: #{tpu_custom_call.1} parent=1 // pred_check_branch
      %894 = sbr.rel (0) target = $region45
    $region44: #{tpu_custom_call.1} parent=1 // pred_region
      %896 = dma.done [#allocation4], 448
    $region45: #{tpu_custom_call.1} parent=1 // pred_fallthru
      _
    %897 = vsyncpa [#allocation3], 1
    %898 = vsyncpa [#allocation6], 1
    %899 = vsyncpa [#allocation4], 1

</llo_original>
